<compile_context>
chip_gen: v7x
topology: tpu7x:2x2x1
jax: 0.10.0
libtpu: 0.0.40
codegen_flags: <defaults>
</compile_context>

<pallas_src>
import math

import jax
import jax.numpy as jnp
from jax.experimental import pallas as pl
from jax.experimental.pallas import tpu as pltpu


def gcn_kernel(adj_ref, x_ref, wt_ref, b_ref, o_ref):
    # adj_ref: (bb, N, N)      bf16
    # x_ref  : (bb, N, D)      bf16
    # wt_ref : (D, Fp)         bf16   (shared weight, already transposed, padded)
    # b_ref  : (1, Fp)         f32    (shared bias, padded)
    # o_ref  : (bb, N, Fp)     f32    (lane-dense: Fp is a multiple of 128)
    ax = jnp.einsum(
        "bnm,bmd->bnd", adj_ref[...], x_ref[...],
        preferred_element_type=jnp.float32)                      # (bb, N, D) f32
    support = jnp.einsum(
        "bnd,df->bnf", ax.astype(jnp.bfloat16), wt_ref[...],
        preferred_element_type=jnp.float32)                      # (bb, N, Fp) f32
    o_ref[...] = (support + b_ref[...]).astype(o_ref.dtype)


def gcn_forward(adj, x, weight, bias, *, batch_steps=1):
    """GCN layer: (adj @ x) @ weight.T + bias.

    adj:    [B, N, N]
    x:      [B, N, D]
    weight: [D_out, D]   (nn.Linear layout, shared across batch)
    bias:   [D_out]
    batch_steps: 1 (fully collapsed grid; best on v5e/v6e) or B (one batch
        element per "parallel" grid step; lets v7x shard across its 2 TCs).
    Returns [B, N, D_out] in x.dtype.
    """
    B, N, D = x.shape
    D_out = weight.shape[0]
    assert B % batch_steps == 0
    bb = B // batch_steps
    f_pad = ((D_out + 127) // 128) * 128   # lane-dense output width

    # bf16 MXU operands; zero-pad the projection to the padded lane width.
    adj_b = adj.astype(jnp.bfloat16)
    x_b = x.astype(jnp.bfloat16)
    wt = jnp.zeros((D, f_pad), jnp.bfloat16).at[:, :D_out].set(
        weight.T.astype(jnp.bfloat16))
    b2 = jnp.zeros((1, f_pad), jnp.float32).at[0, :D_out].set(
        bias.astype(jnp.float32))

    flops = 2 * B * N * N * D + 2 * B * N * D * f_pad
    bytes_accessed = (B * N * N * 2 + B * N * D * 2 + D * f_pad * 2
                      + f_pad * 4 + B * N * f_pad * 4)

    out = pl.pallas_call(
        gcn_kernel,
        out_shape=jax.ShapeDtypeStruct((B, N, f_pad), jnp.float32),
        grid_spec=pltpu.PrefetchScalarGridSpec(
            num_scalar_prefetch=0,
            grid=(batch_steps,),
            in_specs=[
                pl.BlockSpec((bb, N, N), lambda i: (i, 0, 0)),
                pl.BlockSpec((bb, N, D), lambda i: (i, 0, 0)),
                pl.BlockSpec((D, f_pad), lambda i: (0, 0)),   # shared, resident
                pl.BlockSpec((1, f_pad), lambda i: (0, 0)),   # shared, resident
            ],
            out_specs=pl.BlockSpec((bb, N, f_pad), lambda i: (i, 0, 0)),
        ),
        compiler_params=pltpu.CompilerParams(
            dimension_semantics=("parallel",),
        ),
        cost_estimate=pl.CostEstimate(
            flops=flops, transcendentals=0, bytes_accessed=bytes_accessed),
    )(adj_b, x_b, wt, b2)

    return out[:, :, :D_out].astype(x.dtype)


if __name__ == "__main__":
    # Small shapes consistent with Unet3's GCN usage (e.g. start_gcn):
    # batch=2, N=16 graph nodes (5-way 3-shot + 1 query), feature dim 32.
    B, N = 2, 16
    in_dim, out_dim = 32, 32

    key = jax.random.PRNGKey(0)
    kw, kb, kx, ka = jax.random.split(key, 4)

    # nn.Linear-style init: uniform(-1/sqrt(fan_in), 1/sqrt(fan_in)).
    stdv = 1.0 / math.sqrt(in_dim)
    weight = jax.random.uniform(kw, (out_dim, in_dim),
                                minval=-stdv, maxval=stdv, dtype=jnp.float32)
    bias = jax.random.uniform(kb, (out_dim,),
                              minval=-stdv, maxval=stdv, dtype=jnp.float32)

    x = jax.random.normal(kx, (B, N, in_dim), dtype=jnp.float32)
    # Row-stochastic adjacency (the MLP module produces a softmax adjacency).
    adj = jax.nn.softmax(jax.random.normal(ka, (B, N, N), dtype=jnp.float32),
                         axis=-1)

    # Collapsed-grid path (v5e/v6e default).
    out = jax.block_until_ready(gcn_forward(adj, x, weight, bias,
                                            batch_steps=1))
    # Per-batch-step "parallel" path (v7x two-core friendly); must agree.
    out_steps = jax.block_until_ready(gcn_forward(adj, x, weight, bias,
                                                  batch_steps=B))

    # Pure-JAX reference mirroring the kernel's bf16-operand / f32-accumulate
    # numerics exactly.
    adj_r = adj.astype(jnp.bfloat16).astype(jnp.float32)
    x_r = x.astype(jnp.bfloat16).astype(jnp.float32)
    w_r = weight.astype(jnp.bfloat16).astype(jnp.float32)
    ax = jnp.einsum("bnm,bmd->bnd", adj_r, x_r)
    ax = ax.astype(jnp.bfloat16).astype(jnp.float32)
    ref = jnp.einsum("bnd,fd->bnf", ax, w_r) + bias

    assert out.shape == (B, N, out_dim)
    assert jnp.allclose(out, ref, atol=2e-2, rtol=2e-2), \
        float(jnp.max(jnp.abs(out - ref)))
    assert jnp.allclose(out, out_steps, atol=1e-4, rtol=1e-4)

    print("KERNEL_OK")
</pallas_src>

<mosaic_0001>
module attributes {stable_mosaic.version = 11 : i64} {
  func.func @gcn_kernel(%arg0: i32, %arg1: memref<2x16x16xbf16, #tpu.memory_space<vmem>>, %arg2: memref<2x16x32xbf16, #tpu.memory_space<vmem>>, %arg3: memref<32x128xbf16, #tpu.memory_space<vmem>>, %arg4: memref<1x128xf32, #tpu.memory_space<vmem>>, %arg5: memref<2x16x128xf32, #tpu.memory_space<vmem>>) attributes {dimension_semantics = [#tpu.dimension_semantics<parallel>], iteration_bounds = array<i64: 1>, scalar_prefetch = 0 : i64, scratch_operands = 0 : i64, tpu.core_type = #tpu.core_type<tc>, window_params = [{transform_indices = @transform_0, window_bounds = array<i64: 2, 16, 16>}, {transform_indices = @transform_1, window_bounds = array<i64: 2, 16, 32>}, {pipeline_mode = #tpu.pipeline_mode<synchronous>, transform_indices = @transform_2, window_bounds = array<i64: 32, 128>}, {pipeline_mode = #tpu.pipeline_mode<synchronous>, transform_indices = @transform_3, window_bounds = array<i64: 1, 128>}, {transform_indices = @transform_4, window_bounds = array<i64: 2, 16, 128>}]} {
    %c0 = arith.constant 0 : index
    %c0_0 = arith.constant 0 : index
    %c0_1 = arith.constant 0 : index
    %0 = vector.load %arg1[%c0, %c0_0, %c0_1] : memref<2x16x16xbf16, #tpu.memory_space<vmem>>, vector<2x16x16xbf16>
    %c0_2 = arith.constant 0 : index
    %c0_3 = arith.constant 0 : index
    %c0_4 = arith.constant 0 : index
    %1 = vector.load %arg2[%c0_2, %c0_3, %c0_4] : memref<2x16x32xbf16, #tpu.memory_space<vmem>>, vector<2x16x32xbf16>
    "tpu.trace_start"() <{level = 10 : i32, message = "bnm,bmd->bnd"}> : () -> ()
    %cst = arith.constant dense<0.000000e+00> : vector<2x16x32xf32>
    %2 = tpu.matmul %0, %1, %cst {dimension_numbers = #tpu.dot_dimension_numbers<[2], [1], [1], [2], [0, 0, 0, 1, 1, 2], [0], [0]>} : vector<2x16x16xbf16>, vector<2x16x32xbf16>, vector<2x16x32xf32> -> vector<2x16x32xf32>
    "tpu.trace_stop"() : () -> ()
    %3 = arith.truncf %2 : vector<2x16x32xf32> to vector<2x16x32xbf16>
    %c0_5 = arith.constant 0 : index
    %c0_6 = arith.constant 0 : index
    %4 = vector.load %arg3[%c0_5, %c0_6] : memref<32x128xbf16, #tpu.memory_space<vmem>>, vector<32x128xbf16>
    "tpu.trace_start"() <{level = 10 : i32, message = "bnd,df->bnf"}> : () -> ()
    %cst_7 = arith.constant dense<0.000000e+00> : vector<2x16x128xf32>
    %5 = tpu.matmul %3, %4, %cst_7 {dimension_numbers = #tpu.dot_dimension_numbers<[2], [0], [0, 1], [1], [0, 0, 0, 1, 1, 1], [], []>} : vector<2x16x32xbf16>, vector<32x128xbf16>, vector<2x16x128xf32> -> vector<2x16x128xf32>
    "tpu.trace_stop"() : () -> ()
    %c0_8 = arith.constant 0 : index
    %c0_9 = arith.constant 0 : index
    %6 = vector.load %arg4[%c0_8, %c0_9] : memref<1x128xf32, #tpu.memory_space<vmem>>, vector<1x128xf32>
    %7 = vector.shape_cast %6 : vector<1x128xf32> to vector<1x1x128xf32>
    %8 = vector.broadcast %7 : vector<1x1x128xf32> to vector<2x16x128xf32>
    %9 = arith.addf %5, %8 : vector<2x16x128xf32>
    %c0_10 = arith.constant 0 : index
    %c0_11 = arith.constant 0 : index
    %c0_12 = arith.constant 0 : index
    %10 = vector.load %arg5[%c0_10, %c0_11, %c0_12] : memref<2x16x128xf32, #tpu.memory_space<vmem>>, vector<2x16x128xf32>
    tpu.vector_store %arg5[%c0_10, %c0_11, %c0_12], %9 {strides = array<i32>} : memref<2x16x128xf32, #tpu.memory_space<vmem>>, vector<2x16x128xf32>,
    return
  }
  func.func @transform_0(%arg0: i32) -> (i32, i32, i32) {
    %c0_i32 = arith.constant 0 : i32
    %c0_i32_0 = arith.constant 0 : i32
    %c0_i32_1 = arith.constant 0 : i32
    return %arg0, %c0_i32, %c0_i32_0 : i32, i32, i32
  }
  func.func @transform_1(%arg0: i32) -> (i32, i32, i32) {
    %c0_i32 = arith.constant 0 : i32
    %c0_i32_0 = arith.constant 0 : i32
    %c0_i32_1 = arith.constant 0 : i32
    return %arg0, %c0_i32, %c0_i32_0 : i32, i32, i32
  }
  func.func @transform_2(%arg0: i32) -> (i32, i32) {
    %c0_i32 = arith.constant 0 : i32
    %c0_i32_0 = arith.constant 0 : i32
    %c0_i32_1 = arith.constant 0 : i32
    return %c0_i32, %c0_i32_0 : i32, i32
  }
  func.func @transform_3(%arg0: i32) -> (i32, i32) {
    %c0_i32 = arith.constant 0 : i32
    %c0_i32_0 = arith.constant 0 : i32
    %c0_i32_1 = arith.constant 0 : i32
    return %c0_i32, %c0_i32_0 : i32, i32
  }
  func.func @transform_4(%arg0: i32) -> (i32, i32, i32) {
    %c0_i32 = arith.constant 0 : i32
    %c0_i32_0 = arith.constant 0 : i32
    %c0_i32_1 = arith.constant 0 : i32
    return %arg0, %c0_i32, %c0_i32_0 : i32, i32, i32
  }
}

</mosaic_0001>

<llo_original>
// kernel: tpu_custom_call.1
$region0: #{tpu_custom_call.1}
  #allocation0 [shape = 'u32[]', space=smem, size = 0x4, offset = 0x4, fixed_abs, tag = 'smem constant byte address 0x4 - core index']
  #allocation1 [shape = 'u32[144,128]{1,0:T(1,128)}', space=vmem, size = 0x12000, scoped, tag = 'internal scratch']
  %s0 = inlined_call_operand.hbm [shape: bf16[2,16,16], index: 0, kind: input, shape index: {}]
  %s1 = inlined_call_operand.hbm [shape: bf16[2,16,32], index: 1, kind: input, shape index: {}]
  %s2 = inlined_call_operand.hbm [shape: bf16[32,128], index: 2, kind: input, shape index: {}]
  %s3 = inlined_call_operand.vmem [shape: f32[1,128], index: 3, kind: input, shape index: {}]
  %s4 = inlined_call_operand.hbm [shape: f32[2,16,128], index: 4, kind: output, shape index: {}]
  %s5 = sld [smem:[#allocation0]]
  $region38: #{tpu_custom_call.1} parent=0
    _
  %s7 = ssub.s32 1, %s5
  %s8 = scalar_select 0, %s7, %s5
  $region1: #{tpu_custom_call.1} parent=0
    #allocation2 [shape = 'u8[8192]{0}', space=vmem, size = 0x2000, scoped, tag = 'input window, operand 0, single buffered']
    #allocation3 [shape = 's32[1]{0}', space=sflag, size = 0x4, scoped, tag = 'scoped memory for tpu_custom_call.1']
    #allocation4 [shape = 's32[1]{0}', space=sflag, size = 0x4, scoped, tag = 'scoped memory for tpu_custom_call.1']
    #allocation5 [shape = 'u8[8192]{0}', space=vmem, size = 0x2000, scoped, tag = 'input window, operand 1, single buffered']
    #allocation6 [shape = 's32[1]{0}', space=sflag, size = 0x4, scoped, tag = 'scoped memory for tpu_custom_call.1']
    #allocation7 [shape = 'u8[8192]{0}', space=vmem, size = 0x2000, scoped, tag = 'input window, operand 2, single buffered']
    #allocation8 [shape = 'u8[16384]{0}', space=vmem, size = 0x4000, scoped, tag = 'output window, operand 0, single buffered']
    %9 = vsyncpa [#allocation3], 0
    %10 = vsyncpa [#allocation6], 0
    %11 = vsyncpa [#allocation4], 0
    // Predicated region
    $region2: #{tpu_custom_call.1} parent=1 // pred_check
      _
    $region3: #{tpu_custom_call.1} parent=1 // pred_check_branch
      %13 = sbr.rel (0) target = $region5
    $region4: #{tpu_custom_call.1} parent=1 // pred_region
      %s15 = ssub.s32 256, 256
      %16 = vsyncadd [#allocation3], %s15
      %s17 = sshll.u32 [#allocation2], 4
      %s18 = int_to_ptr.vmem [resolvable:$true] %s17
      %23 = dma.hbm_to_vmem [thread:$0]  %s0, 256, %s18, [#allocation3], 64, 64, 4
    $region5: #{tpu_custom_call.1} parent=1 // pred_fallthru
      _
    // Predicated region
    $region6: #{tpu_custom_call.1} parent=1 // pred_check
      _
    $region7: #{tpu_custom_call.1} parent=1 // pred_check_branch
      %25 = sbr.rel (0) target = $region9
    $region8: #{tpu_custom_call.1} parent=1 // pred_region
      %s27 = ssub.s32 256, 256
      %28 = vsyncadd [#allocation6], %s27
      %s29 = sshll.u32 [#allocation5], 4
      %s30 = int_to_ptr.vmem [resolvable:$true] %s29
      %35 = dma.hbm_to_vmem [thread:$0]  %s1, 256, %s30, [#allocation6], 64, 64, 4
    $region9: #{tpu_custom_call.1} parent=1 // pred_fallthru
      _
    // Predicated region
    $region10: #{tpu_custom_call.1} parent=1 // pred_check
      _
    $region11: #{tpu_custom_call.1} parent=1 // pred_check_branch
      %37 = sbr.rel (0) target = $region13
    $region12: #{tpu_custom_call.1} parent=1 // pred_region
      %s39 = ssub.s32 256, 256
      %40 = vsyncadd [#allocation6], %s39
      %s41 = sshll.u32 [#allocation7], 4
      %s42 = int_to_ptr.vmem [resolvable:$true] %s41
      %47 = dma.hbm_to_vmem [thread:$0]  %s2, 256, %s42, [#allocation6], 64, 64, 4
    $region13: #{tpu_custom_call.1} parent=1 // pred_fallthru
      _
    // Predicated region
    $region14: #{tpu_custom_call.1} parent=1 // pred_check
      _
    $region15: #{tpu_custom_call.1} parent=1 // pred_check_branch
      %49 = sbr.rel (0) target = $region17
    $region16: #{tpu_custom_call.1} parent=1 // pred_region
      _
    $region17: #{tpu_custom_call.1} parent=1 // pred_fallthru
      _
    // Predicated region
    $region18: #{tpu_custom_call.1} parent=1 // pred_check
      _
    $region19: #{tpu_custom_call.1} parent=1 // pred_check_branch
      %51 = sbr.rel (0) target = $region21
    $region20: #{tpu_custom_call.1} parent=1 // pred_region
      %52 = dma.done [#allocation3], 256
    $region21: #{tpu_custom_call.1} parent=1 // pred_fallthru
      _
    // Predicated region
    $region22: #{tpu_custom_call.1} parent=1 // pred_check
      _
    $region23: #{tpu_custom_call.1} parent=1 // pred_check_branch
      %54 = sbr.rel (0) target = $region25
    $region24: #{tpu_custom_call.1} parent=1 // pred_region
      %55 = dma.done [#allocation6], 256
    $region25: #{tpu_custom_call.1} parent=1 // pred_fallthru
      _
    // Predicated region
    $region26: #{tpu_custom_call.1} parent=1 // pred_check
      _
    $region27: #{tpu_custom_call.1} parent=1 // pred_check_branch
      %57 = sbr.rel (0) target = $region29
    $region28: #{tpu_custom_call.1} parent=1 // pred_region
      %58 = dma.done [#allocation6], 256
    $region29: #{tpu_custom_call.1} parent=1 // pred_fallthru
      _
    %v60 = vld [vmem:[#allocation2] sm:$0xf]
    %v61 = vld [vmem:[#allocation2 + $0x4] sm:$0xf]
    %v62 = vld [vmem:[#allocation2 + $0x8] sm:$0xf]
    %v63 = vld [vmem:[#allocation2 + $0xc] sm:$0xf]
    %v64 = vld [vmem:[#allocation5] sm:$0xf]
    %v65 = vld [vmem:[#allocation5 + $0x4] sm:$0xf]
    %v66 = vld [vmem:[#allocation5 + $0x8] sm:$0xf]
    %v67 = vld [vmem:[#allocation5 + $0xc] sm:$0xf]
    %v70 = vunpack.c.l.b16 %v60
    %v71 = vunpack.c.l.b16 %v61
    %v72 = vpack.c.b16 %v71, %v70
    %v75 = vunpack.c.l.b16 %v64
    %v76 = vunpack.c.l.b16 %v65
    %v77 = vpack.c.b16 %v76, %v75
    %vm79 = vcmask 130048
    %v81 = vsel %vm79, %v72, 0
    %83 = vmatprep.subr.bf16.mxu0 0
    %84 = vmatpush1.bf16.msra.mxu0 %v77
    %85 = vmatprep.subr.bf16.mxu0 0
    %86 = vmatpush1.bf16.msra.mxu0 0
    %87 = vmatprep.subr.bf16.mxu0 0
    %88 = vmatpush1.bf16.msra.mxu0 0
    %89 = vmatprep.subr.bf16.mxu0 0
    %90 = vmatpush1.bf16.msra.mxu0 0
    %91 = vmatprep.subr.bf16.mxu0 0
    %92 = vmatpush1.bf16.msra.mxu0 0
    %93 = vmatprep.subr.bf16.mxu0 0
    %94 = vmatpush1.bf16.msra.mxu0 0
    %95 = vmatprep.subr.bf16.mxu0 0
    %96 = vmatpush1.bf16.msra.mxu0 0
    %97 = vmatprep.subr.bf16.mxu0 0
    %98 = vmatpush1.bf16.msra.mxu0 0
    %99 = vmatprep.subr.bf16.mxu0 0
    %100 = vmatpush1.bf16.msra.mxu0 0
    %101 = vmatprep.subr.bf16.mxu0 0
    %102 = vmatpush1.bf16.msra.mxu0 0
    %103 = vmatprep.subr.bf16.mxu0 0
    %104 = vmatpush1.bf16.msra.mxu0 0
    %105 = vmatprep.subr.bf16.mxu0 0
    %106 = vmatpush1.bf16.msra.mxu0 0
    %107 = vmatprep.subr.bf16.mxu0 0
    %108 = vmatpush1.bf16.msra.mxu0 0
    %109 = vmatprep.subr.bf16.mxu0 0
    %110 = vmatpush1.bf16.msra.mxu0 0
    %111 = vmatprep.subr.bf16.mxu0 0
    %112 = vmatpush1.bf16.msra.mxu0 0
    %113 = vmatprep.subr.bf16.mxu0 0
    %114 = vmatpush1.bf16.msra.mxu0 0
    %115 = vmatprep.mubr.bf16.mxu0 0
    %116 = vmatmul.mubr.bf16.gmra.mrb[0].mxu0 %v81
    %v117 = vpop.f32.mrb[0].mxu0
    %v118 = vadd.f32 0.0, %v117
    %v119 = vpop.f32.mrb[0].mxu0
    %v120 = vpop.f32.mrb[0].mxu0
    %v121 = vadd.f32 0.0, %v120
    %v122 = vpop.f32.mrb[0].mxu0
    %123 = vdwg.mxu0
    %v126 = vunpack.c.l.b16 %v62
    %v127 = vunpack.c.l.b16 %v63
    %v128 = vpack.c.b16 %v127, %v126
    %v131 = vunpack.c.l.b16 %v66
    %v132 = vunpack.c.l.b16 %v67
    %v133 = vpack.c.b16 %v132, %v131
    %v136 = vsel %vm79, %v128, 0
    %138 = vmatprep.subr.bf16.mxu0 0
    %139 = vmatpush1.bf16.msra.mxu0 %v133
    %140 = vmatprep.subr.bf16.mxu0 0
    %141 = vmatpush1.bf16.msra.mxu0 0
    %142 = vmatprep.subr.bf16.mxu0 0
    %143 = vmatpush1.bf16.msra.mxu0 0
    %144 = vmatprep.subr.bf16.mxu0 0
    %145 = vmatpush1.bf16.msra.mxu0 0
    %146 = vmatprep.subr.bf16.mxu0 0
    %147 = vmatpush1.bf16.msra.mxu0 0
    %148 = vmatprep.subr.bf16.mxu0 0
    %149 = vmatpush1.bf16.msra.mxu0 0
    %150 = vmatprep.subr.bf16.mxu0 0
    %151 = vmatpush1.bf16.msra.mxu0 0
    %152 = vmatprep.subr.bf16.mxu0 0
    %153 = vmatpush1.bf16.msra.mxu0 0
    %154 = vmatprep.subr.bf16.mxu0 0
    %155 = vmatpush1.bf16.msra.mxu0 0
    %156 = vmatprep.subr.bf16.mxu0 0
    %157 = vmatpush1.bf16.msra.mxu0 0
    %158 = vmatprep.subr.bf16.mxu0 0
    %159 = vmatpush1.bf16.msra.mxu0 0
    %160 = vmatprep.subr.bf16.mxu0 0
    %161 = vmatpush1.bf16.msra.mxu0 0
    %162 = vmatprep.subr.bf16.mxu0 0
    %163 = vmatpush1.bf16.msra.mxu0 0
    %164 = vmatprep.subr.bf16.mxu0 0
    %165 = vmatpush1.bf16.msra.mxu0 0
    %166 = vmatprep.subr.bf16.mxu0 0
    %167 = vmatpush1.bf16.msra.mxu0 0
    %168 = vmatprep.subr.bf16.mxu0 0
    %169 = vmatpush1.bf16.msra.mxu0 0
    %170 = vmatprep.mubr.bf16.mxu0 0
    %171 = vmatmul.mubr.bf16.gmra.mrb[0].mxu0 %v136
    %v172 = vpop.f32.mrb[0].mxu0
    %v173 = vadd.f32 0.0, %v172
    %v174 = vpop.f32.mrb[0].mxu0
    %v175 = vpop.f32.mrb[0].mxu0
    %v176 = vadd.f32 0.0, %v175
    %v177 = vpop.f32.mrb[0].mxu0
    %178 = vdwg.mxu0
    %v179 = vpack.c.bf16 %v121, %v118
    %v180 = vpack.c.bf16 %v176, %v173
    %v181 = vld [vmem:[#allocation7] sm:$0xf]
    %v182 = vld [vmem:[#allocation7 + $0x4] sm:$0xf]
    %v183 = vld [vmem:[#allocation7 + $0x8] sm:$0xf]
    %v184 = vld [vmem:[#allocation7 + $0xc] sm:$0xf]
    %v185 = vld [vmem:[%s3] sm:$0x1]
    %v187 = vlaneseq
    %v188 = vshrl.u32 %v187, 7
    %v189 = vsub.s32 0, %v188
    %v190 = vrot.slane %v185, %v189
    %v196 = vunpack.c.l.b16 %v181
    %v197 = vunpack.c.l.b16 %v182
    %v198 = vunpack.c.l.b16 %v183
    %v199 = vunpack.c.l.b16 %v184
    %v200 = vpack.c.b16 %v197, %v196
    %v201 = vpack.c.b16 %v199, %v198
    %vm204 = vcmask 261120
    %v206 = vsel %vm204, %v179, 0
    %v209 = vsel %vm204, %v180, 0
    %211 = vmatprep.subr.bf16.mxu0 0
    %212 = vmatpush1.bf16.msra.mxu0 %v200
    %213 = vmatprep.subr.bf16.mxu0 0
    %214 = vmatpush1.bf16.msra.mxu0 %v201
    %215 = vmatprep.subr.bf16.mxu0 0
    %216 = vmatpush1.bf16.msra.mxu0 0
    %217 = vmatprep.subr.bf16.mxu0 0
    %218 = vmatpush1.bf16.msra.mxu0 0
    %219 = vmatprep.subr.bf16.mxu0 0
    %220 = vmatpush1.bf16.msra.mxu0 0
    %221 = vmatprep.subr.bf16.mxu0 0
    %222 = vmatpush1.bf16.msra.mxu0 0
    %223 = vmatprep.subr.bf16.mxu0 0
    %224 = vmatpush1.bf16.msra.mxu0 0
    %225 = vmatprep.subr.bf16.mxu0 0
    %226 = vmatpush1.bf16.msra.mxu0 0
    %227 = vmatprep.subr.bf16.mxu0 0
    %228 = vmatpush1.bf16.msra.mxu0 0
    %229 = vmatprep.subr.bf16.mxu0 0
    %230 = vmatpush1.bf16.msra.mxu0 0
    %231 = vmatprep.subr.bf16.mxu0 0
    %232 = vmatpush1.bf16.msra.mxu0 0
    %233 = vmatprep.subr.bf16.mxu0 0
    %234 = vmatpush1.bf16.msra.mxu0 0
    %235 = vmatprep.subr.bf16.mxu0 0
    %236 = vmatpush1.bf16.msra.mxu0 0
    %237 = vmatprep.subr.bf16.mxu0 0
    %238 = vmatpush1.bf16.msra.mxu0 0
    %239 = vmatprep.subr.bf16.mxu0 0
    %240 = vmatpush1.bf16.msra.mxu0 0
    %241 = vmatprep.subr.bf16.mxu0 0
    %242 = vmatpush1.bf16.msra.mxu0 0
    %243 = vmatprep.mubr.bf16.mxu0 0
    %244 = vmatmul.mubr.bf16.gmra.mrb[0].mxu0 %v206
    %v245 = vpop.f32.mrb[0].mxu0
    %v246 = vadd.f32 %v190, %v245
    %v247 = vpop.f32.mrb[0].mxu0
    %v248 = vpop.f32.mrb[0].mxu0
    %v249 = vadd.f32 %v190, %v248
    %v250 = vpop.f32.mrb[0].mxu0
    %251 = vmatprep.mubr.bf16.mxu0 0
    %252 = vmatmul.mubr.bf16.gmra.mrb[0].mxu0 %v209
    %v253 = vpop.f32.mrb[0].mxu0
    %v254 = vadd.f32 %v190, %v253
    %v255 = vpop.f32.mrb[0].mxu0
    %v256 = vpop.f32.mrb[0].mxu0
    %v257 = vadd.f32 %v190, %v256
    %v258 = vpop.f32.mrb[0].mxu0
    %259 = vdwg.mxu0
    %260 = vst [vmem:[#allocation8] sm:$0xff] %v246
    %261 = vst [vmem:[#allocation8 + $0x8] sm:$0xff] %v249
    %262 = vst [vmem:[#allocation8 + $0x10] sm:$0xff] %v254
    %263 = vst [vmem:[#allocation8 + $0x18] sm:$0xff] %v257
    // Predicated region
    $region30: #{tpu_custom_call.1} parent=1 // pred_check
      _
    $region31: #{tpu_custom_call.1} parent=1 // pred_check_branch
      %265 = sbr.rel (0) target = $region33
    $region32: #{tpu_custom_call.1} parent=1 // pred_region
      %s267 = ssub.s32 512, 512
      %268 = vsyncadd [#allocation4], %s267
      %s269 = sshll.u32 [#allocation8], 4
      %s270 = int_to_ptr.vmem [resolvable:$true] %s269
      %275 = dma.vmem_to_hbm [thread:$0]  %s270, 512, %s4, [#allocation4], 128, 128, 8
    $region33: #{tpu_custom_call.1} parent=1 // pred_fallthru
      _
    // Predicated region
    $region34: #{tpu_custom_call.1} parent=1 // pred_check
      _
    $region35: #{tpu_custom_call.1} parent=1 // pred_check_branch
      %277 = sbr.rel (0) target = $region37
    $region36: #{tpu_custom_call.1} parent=1 // pred_region
      %278 = dma.done [#allocation4], 512
    $region37: #{tpu_custom_call.1} parent=1 // pred_fallthru
      _
    %279 = vsyncpa [#allocation3], 1
    %280 = vsyncpa [#allocation6], 1
    %281 = vsyncpa [#allocation4], 1

</llo_original>
